<compile_context>
chip_gen: v7x
topology: tpu7x:2x2x1
jax: 0.10.0
libtpu: 0.0.40
codegen_flags: <defaults>
</compile_context>

<pallas_src>
import functools

import jax
import jax.numpy as jnp
from jax.experimental import pallas as pl
from jax.experimental.pallas import tpu as pltpu


def _round_up(n, m):
    return ((n + m - 1) // m) * m


def qvalue_kernel(x_ref, a_ref, w1x_ref, w1a_ref, b1_ref, w2_ref, b2_ref,
                  w3_ref, b3_ref, out_ref):
    # x: (TB, S)  a: (TB, A)   w1x: (S, H)  w1a: (A, H)  b1: (1, H)
    # w2: (H, H)  b2: (1, H)   w3: (H, 1)   b3: (1, 1) in SMEM
    # out: (1, TB)  -- lane-major: batch mapped to the 128-lane axis
    cdt = w1x_ref.dtype  # MXU operand dtype (bf16 or f32); accumulation is f32

    x = x_ref[...].astype(cdt)
    a = a_ref[...].astype(cdt)

    # fc1 without the concat: [x | a] @ [W1x ; W1a] == x@W1x + a@W1a
    h1 = (jnp.dot(x, w1x_ref[...], preferred_element_type=jnp.float32)
          + jnp.dot(a, w1a_ref[...], preferred_element_type=jnp.float32)
          + b1_ref[...])
    h1 = jnp.maximum(h1, 0.0)

    h2 = jnp.dot(h1.astype(cdt), w2_ref[...],
                 preferred_element_type=jnp.float32) + b2_ref[...]
    h2 = jnp.maximum(h2, 0.0)                           # (TB, H), f32

    # fc_out (H -> 1): XLU transpose + lane-broadcast multiply + sublane sum.
    # Produces a lane-dense (1, TB) row; avoids the N=1 MXU matmul and the
    # masked stores a (TB, 1) output block would need.
    h2t = h2.T                                          # (H, TB)
    w3 = w3_ref[...].astype(jnp.float32)                # (H, 1) -> bcast over lanes
    q = jnp.sum(h2t * w3, axis=0, keepdims=True) + b3_ref[0, 0]
    out_ref[...] = q.astype(out_ref.dtype)


@functools.partial(jax.jit, static_argnames=("tile_b_max",))
def qvalue_net(x, a, params, *, tile_b_max=512):
    """DDPG critic forward.  x: (B, S), a: (B, A) -> (B, 1) float32."""
    w1x, w1a, b1, w2, b2, w3, b3 = params
    B, S = x.shape
    A = a.shape[1]
    H = w2.shape[0]

    assert tile_b_max % 128 == 0, "tile_b_max must be a multiple of 128"
    if B > tile_b_max:
        tile_b = tile_b_max                 # multi-tile: lane-aligned tiles
    else:
        tile_b = _round_up(B, 8)            # single tile covering the batch
    grid = pl.cdiv(B, tile_b)
    b_pad = grid * tile_b
    if b_pad != B:                          # guard the last (partial) tile
        x = jnp.pad(x, ((0, b_pad - B), (0, 0)))
        a = jnp.pad(a, ((0, b_pad - B), (0, 0)))

    const = lambda i: (0, 0)                # weights/biases resident across grid
    out = pl.pallas_call(
        qvalue_kernel,
        out_shape=jax.ShapeDtypeStruct((1, b_pad), jnp.float32),
        grid=(grid,),
        in_specs=[
            pl.BlockSpec((tile_b, S), lambda i: (i, 0)),            # x
            pl.BlockSpec((tile_b, A), lambda i: (i, 0)),            # a
            pl.BlockSpec((S, H), const),                            # W1x
            pl.BlockSpec((A, H), const),                            # W1a
            pl.BlockSpec((1, H), const),                            # b1
            pl.BlockSpec((H, H), const),                            # W2
            pl.BlockSpec((1, H), const),                            # b2
            pl.BlockSpec((H, 1), const),                            # W3
            pl.BlockSpec(memory_space=pltpu.MemorySpace.SMEM),      # b3 (1,1)
        ],
        out_specs=pl.BlockSpec((1, tile_b), lambda i: (0, i)),
        compiler_params=pltpu.CompilerParams(
            dimension_semantics=("parallel",)),
    )(x, a, w1x, w1a, b1, w2, b2, w3, b3)

    return out[0, :B, None]                 # back to (B, 1)


def init_params(key, state_dim, hidden_dim, action_dim, *,
                weight_dtype=jnp.bfloat16):
    """PyTorch nn.Linear default init: U(-1/sqrt(fan_in), +1/sqrt(fan_in)).

    fc1's weight is generated as one (S+A, H) matrix (so the math matches the
    concatenated PyTorch layer exactly) and split into the (S, H)/(A, H)
    halves the concat-free kernel consumes.  Weights are stored in
    `weight_dtype` (bf16 by default); biases stay f32.
    """
    def linear(key, fan_in, fan_out):
        kw, kb = jax.random.split(key)
        bound = 1.0 / jnp.sqrt(float(fan_in))
        w = jax.random.uniform(kw, (fan_in, fan_out), jnp.float32, -bound, bound)
        b = jax.random.uniform(kb, (1, fan_out), jnp.float32, -bound, bound)
        return w.astype(weight_dtype), b

    k1, k2, k3 = jax.random.split(key, 3)
    w1, b1 = linear(k1, state_dim + action_dim, hidden_dim)
    w2, b2 = linear(k2, hidden_dim, hidden_dim)
    w3, b3 = linear(k3, hidden_dim, 1)
    w1x, w1a = w1[:state_dim], w1[state_dim:]
    return (w1x, w1a, b1, w2, b2, w3, b3)


def reference(x, a, params):
    """Pure-JAX reference with matching numerics (bf16 operands, f32 accum)."""
    w1x, w1a, b1, w2, b2, w3, b3 = params
    cdt = w1x.dtype
    f32 = lambda t: t.astype(jnp.float32)
    h1 = jax.nn.relu(f32(x.astype(cdt)) @ f32(w1x)
                     + f32(a.astype(cdt)) @ f32(w1a) + b1)
    h2 = jax.nn.relu(f32(h1.astype(cdt)) @ f32(w2) + b2)
    return h2 @ f32(w3) + b3


if __name__ == "__main__":
    state_dim, action_dim, hidden_dim = 16, 8, 32
    key = jax.random.PRNGKey(0)
    kp, kx, ka, kx2, ka2 = jax.random.split(key, 5)
    params = init_params(kp, state_dim, hidden_dim, action_dim)

    # Small single-tile case (grid == 1).
    B = 8
    x = jax.random.normal(kx, (B, state_dim), jnp.float32)
    a = jax.random.normal(ka, (B, action_dim), jnp.float32)
    q = qvalue_net(x, a, params)
    jax.block_until_ready(q)
    q_ref = reference(x, a, params)
    assert q.shape == (B, 1), q.shape
    assert jnp.allclose(q, q_ref, atol=1e-3, rtol=1e-3), "small-batch mismatch"

    # Multi-tile case exercising the batch grid + last-tile padding
    # (B not a multiple of the 512-row tile).
    B2 = 1000
    x2 = jax.random.normal(kx2, (B2, state_dim), jnp.float32)
    a2 = jax.random.normal(ka2, (B2, action_dim), jnp.float32)
    q2 = qvalue_net(x2, a2, params)
    jax.block_until_ready(q2)
    q2_ref = reference(x2, a2, params)
    assert q2.shape == (B2, 1), q2.shape
    assert jnp.allclose(q2, q2_ref, atol=1e-3, rtol=1e-3), "tiled-batch mismatch"

    print("KERNEL_OK")
</pallas_src>

<mosaic_0001>
module attributes {stable_mosaic.version = 11 : i64} {
  func.func @qvalue_kernel(%arg0: i32, %arg1: memref<8x16xf32, #tpu.memory_space<vmem>>, %arg2: memref<8x8xf32, #tpu.memory_space<vmem>>, %arg3: memref<16x32xbf16, #tpu.memory_space<vmem>>, %arg4: memref<8x32xbf16, #tpu.memory_space<vmem>>, %arg5: memref<1x32xf32, #tpu.memory_space<vmem>>, %arg6: memref<32x32xbf16, #tpu.memory_space<vmem>>, %arg7: memref<1x32xf32, #tpu.memory_space<vmem>>, %arg8: memref<32x1xbf16, #tpu.memory_space<vmem>>, %arg9: memref<1x1xf32, #tpu.memory_space<smem>>, %arg10: memref<1x8xf32, #tpu.memory_space<vmem>>) attributes {dimension_semantics = [#tpu.dimension_semantics<parallel>], iteration_bounds = array<i64: 1>, scalar_prefetch = 0 : i64, scratch_operands = 0 : i64, tpu.core_type = #tpu.core_type<tc>, window_params = [{transform_indices = @transform_0, window_bounds = array<i64: 8, 16>}, {transform_indices = @transform_1, window_bounds = array<i64: 8, 8>}, {pipeline_mode = #tpu.pipeline_mode<synchronous>, transform_indices = @transform_2, window_bounds = array<i64: 16, 32>}, {pipeline_mode = #tpu.pipeline_mode<synchronous>, transform_indices = @transform_3, window_bounds = array<i64: 8, 32>}, {pipeline_mode = #tpu.pipeline_mode<synchronous>, transform_indices = @transform_4, window_bounds = array<i64: 1, 32>}, {pipeline_mode = #tpu.pipeline_mode<synchronous>, transform_indices = @transform_5, window_bounds = array<i64: 32, 32>}, {pipeline_mode = #tpu.pipeline_mode<synchronous>, transform_indices = @transform_6, window_bounds = array<i64: 1, 32>}, {pipeline_mode = #tpu.pipeline_mode<synchronous>, transform_indices = @transform_7, window_bounds = array<i64: 32, 1>}, {transform_indices = @transform_8, window_bounds = array<i64: 1, 1>}, {transform_indices = @transform_9, window_bounds = array<i64: 1, 8>}]} {
    %c0 = arith.constant 0 : index
    %c0_0 = arith.constant 0 : index
    %0 = vector.load %arg1[%c0, %c0_0] : memref<8x16xf32, #tpu.memory_space<vmem>>, vector<8x16xf32>
    %1 = arith.truncf %0 : vector<8x16xf32> to vector<8x16xbf16>
    %c0_1 = arith.constant 0 : index
    %c0_2 = arith.constant 0 : index
    %2 = vector.load %arg2[%c0_1, %c0_2] : memref<8x8xf32, #tpu.memory_space<vmem>>, vector<8x8xf32>
    %3 = arith.truncf %2 : vector<8x8xf32> to vector<8x8xbf16>
    %c0_3 = arith.constant 0 : index
    %c0_4 = arith.constant 0 : index
    %4 = vector.load %arg3[%c0_3, %c0_4] : memref<16x32xbf16, #tpu.memory_space<vmem>>, vector<16x32xbf16>
    %cst = arith.constant dense<0.000000e+00> : vector<8x32xf32>
    %5 = tpu.matmul %1, %4, %cst {dimension_numbers = #tpu.dot_dimension_numbers<[1], [0], [0], [1], [0, 0, 1, 1], [], []>} : vector<8x16xbf16>, vector<16x32xbf16>, vector<8x32xf32> -> vector<8x32xf32>
    %c0_5 = arith.constant 0 : index
    %c0_6 = arith.constant 0 : index
    %6 = vector.load %arg4[%c0_5, %c0_6] : memref<8x32xbf16, #tpu.memory_space<vmem>>, vector<8x32xbf16>
    %cst_7 = arith.constant dense<0.000000e+00> : vector<8x32xf32>
    %7 = tpu.matmul %3, %6, %cst_7 {dimension_numbers = #tpu.dot_dimension_numbers<[1], [0], [0], [1], [0, 0, 1, 1], [], []>} : vector<8x8xbf16>, vector<8x32xbf16>, vector<8x32xf32> -> vector<8x32xf32>
    %8 = arith.addf %5, %7 : vector<8x32xf32>
    %c0_8 = arith.constant 0 : index
    %c0_9 = arith.constant 0 : index
    %9 = vector.load %arg5[%c0_8, %c0_9] : memref<1x32xf32, #tpu.memory_space<vmem>>, vector<1x32xf32>
    %10 = vector.broadcast %9 : vector<1x32xf32> to vector<8x32xf32>
    %11 = arith.addf %8, %10 : vector<8x32xf32>
    %cst_10 = arith.constant 0.000000e+00 : f32
    %12 = vector.broadcast %cst_10 : f32 to vector<8x32xf32>
    %13 = arith.maximumf %11, %12 : vector<8x32xf32>
    %14 = arith.truncf %13 : vector<8x32xf32> to vector<8x32xbf16>
    %c0_11 = arith.constant 0 : index
    %c0_12 = arith.constant 0 : index
    %15 = vector.load %arg6[%c0_11, %c0_12] : memref<32x32xbf16, #tpu.memory_space<vmem>>, vector<32x32xbf16>
    %cst_13 = arith.constant dense<0.000000e+00> : vector<8x32xf32>
    %16 = tpu.matmul %14, %15, %cst_13 {dimension_numbers = #tpu.dot_dimension_numbers<[1], [0], [0], [1], [0, 0, 1, 1], [], []>} : vector<8x32xbf16>, vector<32x32xbf16>, vector<8x32xf32> -> vector<8x32xf32>
    %c0_14 = arith.constant 0 : index
    %c0_15 = arith.constant 0 : index
    %17 = vector.load %arg7[%c0_14, %c0_15] : memref<1x32xf32, #tpu.memory_space<vmem>>, vector<1x32xf32>
    %18 = vector.broadcast %17 : vector<1x32xf32> to vector<8x32xf32>
    %19 = arith.addf %16, %18 : vector<8x32xf32>
    %cst_16 = arith.constant 0.000000e+00 : f32
    %20 = vector.broadcast %cst_16 : f32 to vector<8x32xf32>
    %21 = arith.maximumf %19, %20 : vector<8x32xf32>
    %22 = tpu.transpose %21, [1, 0] : vector<8x32xf32> -> vector<32x8xf32>
    %c0_17 = arith.constant 0 : index
    %c0_18 = arith.constant 0 : index
    %23 = vector.load %arg8[%c0_17, %c0_18] : memref<32x1xbf16, #tpu.memory_space<vmem>>, vector<32x1xbf16>
    %24 = arith.extf %23 : vector<32x1xbf16> to vector<32x1xf32>
    %25 = vector.broadcast %24 : vector<32x1xf32> to vector<32x8xf32>
    %26 = arith.mulf %22, %25 : vector<32x8xf32>
    %cst_19 = arith.constant dense<0.000000e+00> : vector<8xf32>
    %27 = vector.multi_reduction <add>, %26, %cst_19 [0] : vector<32x8xf32> to vector<8xf32>
    %28 = vector.shape_cast %27 : vector<8xf32> to vector<1x8xf32>
    %c0_20 = arith.constant 0 : index
    %c0_21 = arith.constant 0 : index
    %29 = memref.load %arg9[%c0_20, %c0_21] : memref<1x1xf32, #tpu.memory_space<smem>>
    %30 = vector.broadcast %29 : f32 to vector<1x8xf32>
    %31 = arith.addf %28, %30 : vector<1x8xf32>
    %c0_22 = arith.constant 0 : index
    %c0_23 = arith.constant 0 : index
    %32 = vector.load %arg10[%c0_22, %c0_23] : memref<1x8xf32, #tpu.memory_space<vmem>>, vector<1x8xf32>
    tpu.vector_store %arg10[%c0_22, %c0_23], %31 {strides = array<i32>} : memref<1x8xf32, #tpu.memory_space<vmem>>, vector<1x8xf32>,
    return
  }
  func.func @transform_0(%arg0: i32) -> (i32, i32) {
    %c0_i32 = arith.constant 0 : i32
    %c0_i32_0 = arith.constant 0 : i32
    return %arg0, %c0_i32 : i32, i32
  }
  func.func @transform_1(%arg0: i32) -> (i32, i32) {
    %c0_i32 = arith.constant 0 : i32
    %c0_i32_0 = arith.constant 0 : i32
    return %arg0, %c0_i32 : i32, i32
  }
  func.func @transform_2(%arg0: i32) -> (i32, i32) {
    %c0_i32 = arith.constant 0 : i32
    %c0_i32_0 = arith.constant 0 : i32
    %c0_i32_1 = arith.constant 0 : i32
    return %c0_i32, %c0_i32_0 : i32, i32
  }
  func.func @transform_3(%arg0: i32) -> (i32, i32) {
    %c0_i32 = arith.constant 0 : i32
    %c0_i32_0 = arith.constant 0 : i32
    %c0_i32_1 = arith.constant 0 : i32
    return %c0_i32, %c0_i32_0 : i32, i32
  }
  func.func @transform_4(%arg0: i32) -> (i32, i32) {
    %c0_i32 = arith.constant 0 : i32
    %c0_i32_0 = arith.constant 0 : i32
    %c0_i32_1 = arith.constant 0 : i32
    return %c0_i32, %c0_i32_0 : i32, i32
  }
  func.func @transform_5(%arg0: i32) -> (i32, i32) {
    %c0_i32 = arith.constant 0 : i32
    %c0_i32_0 = arith.constant 0 : i32
    %c0_i32_1 = arith.constant 0 : i32
    return %c0_i32, %c0_i32_0 : i32, i32
  }
  func.func @transform_6(%arg0: i32) -> (i32, i32) {
    %c0_i32 = arith.constant 0 : i32
    %c0_i32_0 = arith.constant 0 : i32
    %c0_i32_1 = arith.constant 0 : i32
    return %c0_i32, %c0_i32_0 : i32, i32
  }
  func.func @transform_7(%arg0: i32) -> (i32, i32) {
    %c0_i32 = arith.constant 0 : i32
    %c0_i32_0 = arith.constant 0 : i32
    %c0_i32_1 = arith.constant 0 : i32
    return %c0_i32, %c0_i32_0 : i32, i32
  }
  func.func @transform_8(%arg0: i32) -> (i32, i32) {
    %c0_i32 = arith.constant 0 : i32
    %c0_i32_0 = arith.constant 0 : i32
    %c0_i32_1 = arith.constant 0 : i32
    return %c0_i32, %c0_i32_0 : i32, i32
  }
  func.func @transform_9(%arg0: i32) -> (i32, i32) {
    %c0_i32 = arith.constant 0 : i32
    %c0_i32_0 = arith.constant 0 : i32
    return %c0_i32, %arg0 : i32, i32
  }
}

</mosaic_0001>

<llo_original>
// kernel: qvalue_net.1
$region0: #{qvalue_net.1}
  #allocation0 [shape = 'u32[]', space=smem, size = 0x4, offset = 0x4, fixed_abs, tag = 'smem constant byte address 0x4 - core index']
  #allocation1 [shape = 'u32[144,128]{1,0:T(1,128)}', space=vmem, size = 0x12000, scoped, tag = 'internal scratch']
  #allocation2 [shape = 'f32[1,1]{1,0:T(1,128)S(6)}', space=smem, size = 0x200, scoped, tag = 'scoped memory for qvalue_net.1']
  %s0 = inlined_call_operand.vmem [shape: f32[8,16], index: 0, kind: input, shape index: {}]
  %s1 = inlined_call_operand.vmem [shape: f32[8,8], index: 1, kind: input, shape index: {}]
  %s2 = inlined_call_operand.hbm [shape: bf16[16,32], index: 2, kind: input, shape index: {}]
  %s3 = inlined_call_operand.hbm [shape: bf16[8,32], index: 3, kind: input, shape index: {}]
  %s4 = inlined_call_operand.vmem [shape: f32[1,32], index: 4, kind: input, shape index: {}]
  %s5 = inlined_call_operand.vmem [shape: bf16[32,32], index: 5, kind: input, shape index: {}]
  %s6 = inlined_call_operand.vmem [shape: f32[1,32], index: 6, kind: input, shape index: {}]
  %s7 = inlined_call_operand.vmem [shape: bf16[32,1], index: 7, kind: input, shape index: {}]
  %s8 = inlined_call_operand.<no memory space> [shape: f32[1,1], index: 8, kind: input, shape index: {}]
  %s9 = inlined_call_operand.hbm [shape: f32[1,8], index: 9, kind: output, shape index: {}]
  %s10 = sld [smem:[#allocation0]]
  $region54: #{qvalue_net.1} parent=0
    _
  %s12 = ssub.s32 1, %s10
  %s13 = scalar_select 0, %s12, %s10
  %14 = sst [smem:[#allocation2]] %s8
  $region1: #{qvalue_net.1} parent=0
    #allocation3 [shape = 'u8[4096]{0}', space=vmem, size = 0x1000, scoped, tag = 'input window, operand 2, single buffered']
    #allocation4 [shape = 's32[1]{0}', space=sflag, size = 0x4, scoped, tag = 'scoped memory for qvalue_net.1']
    #allocation5 [shape = 's32[1]{0}', space=sflag, size = 0x4, scoped, tag = 'scoped memory for qvalue_net.1']
    #allocation6 [shape = 'u8[2048]{0}', space=vmem, size = 0x800, scoped, tag = 'input window, operand 3, single buffered']
    #allocation7 [shape = 's32[1]{0}', space=sflag, size = 0x4, scoped, tag = 'scoped memory for qvalue_net.1']
    #allocation8 [shape = 'u8[512]{0}', space=vmem, size = 0x400, scoped, tag = 'output window, operand 0, single buffered']
    %15 = vsyncpa [#allocation4], 0
    %16 = vsyncpa [#allocation7], 0
    %17 = vsyncpa [#allocation5], 0
    // Predicated region
    $region2: #{qvalue_net.1} parent=1 // pred_check
      _
    $region3: #{qvalue_net.1} parent=1 // pred_check_branch
      %19 = sbr.rel (0) target = $region5
    $region4: #{qvalue_net.1} parent=1 // pred_region
      _
    $region5: #{qvalue_net.1} parent=1 // pred_fallthru
      _
    // Predicated region
    $region6: #{qvalue_net.1} parent=1 // pred_check
      _
    $region7: #{qvalue_net.1} parent=1 // pred_check_branch
      %21 = sbr.rel (0) target = $region9
    $region8: #{qvalue_net.1} parent=1 // pred_region
      _
    $region9: #{qvalue_net.1} parent=1 // pred_fallthru
      _
    // Predicated region
    $region10: #{qvalue_net.1} parent=1 // pred_check
      _
    $region11: #{qvalue_net.1} parent=1 // pred_check_branch
      %23 = sbr.rel (0) target = $region13
    $region12: #{qvalue_net.1} parent=1 // pred_region
      %s25 = ssub.s32 128, 128
      %26 = vsyncadd [#allocation4], %s25
      %s27 = sshll.u32 [#allocation3], 4
      %s28 = int_to_ptr.vmem [resolvable:$true] %s27
      %33 = dma.hbm_to_vmem [thread:$0]  %s2, 128, %s28, [#allocation4], 64, 64, 4
    $region13: #{qvalue_net.1} parent=1 // pred_fallthru
      _
    // Predicated region
    $region14: #{qvalue_net.1} parent=1 // pred_check
      _
    $region15: #{qvalue_net.1} parent=1 // pred_check_branch
      %35 = sbr.rel (0) target = $region17
    $region16: #{qvalue_net.1} parent=1 // pred_region
      %s37 = ssub.s32 64, 64
      %38 = vsyncadd [#allocation7], %s37
      %s40 = sshll.u32 [#allocation6], 4
      %s41 = int_to_ptr.vmem [resolvable:$true] %s40
      %43 = dma.hbm_to_vmem [thread:$0]  %s3, 64, %s41, [#allocation7]
    $region17: #{qvalue_net.1} parent=1 // pred_fallthru
      _
    // Predicated region
    $region18: #{qvalue_net.1} parent=1 // pred_check
      _
    $region19: #{qvalue_net.1} parent=1 // pred_check_branch
      %45 = sbr.rel (0) target = $region21
    $region20: #{qvalue_net.1} parent=1 // pred_region
      _
    $region21: #{qvalue_net.1} parent=1 // pred_fallthru
      _
    // Predicated region
    $region22: #{qvalue_net.1} parent=1 // pred_check
      _
    $region23: #{qvalue_net.1} parent=1 // pred_check_branch
      %47 = sbr.rel (0) target = $region25
    $region24: #{qvalue_net.1} parent=1 // pred_region
      _
    $region25: #{qvalue_net.1} parent=1 // pred_fallthru
      _
    // Predicated region
    $region26: #{qvalue_net.1} parent=1 // pred_check
      _
    $region27: #{qvalue_net.1} parent=1 // pred_check_branch
      %49 = sbr.rel (0) target = $region29
    $region28: #{qvalue_net.1} parent=1 // pred_region
      _
    $region29: #{qvalue_net.1} parent=1 // pred_fallthru
      _
    // Predicated region
    $region30: #{qvalue_net.1} parent=1 // pred_check
      _
    $region31: #{qvalue_net.1} parent=1 // pred_check_branch
      %51 = sbr.rel (0) target = $region33
    $region32: #{qvalue_net.1} parent=1 // pred_region
      _
    $region33: #{qvalue_net.1} parent=1 // pred_fallthru
      _
    // Predicated region
    $region34: #{qvalue_net.1} parent=1 // pred_check
      _
    $region35: #{qvalue_net.1} parent=1 // pred_check_branch
      %53 = sbr.rel (0) target = $region37
    $region36: #{qvalue_net.1} parent=1 // pred_region
      _
    $region37: #{qvalue_net.1} parent=1 // pred_fallthru
      _
    // Predicated region
    $region38: #{qvalue_net.1} parent=1 // pred_check
      _
    $region39: #{qvalue_net.1} parent=1 // pred_check_branch
      %55 = sbr.rel (0) target = $region41
    $region40: #{qvalue_net.1} parent=1 // pred_region
      %56 = dma.done [#allocation4], 128
    $region41: #{qvalue_net.1} parent=1 // pred_fallthru
      _
    // Predicated region
    $region42: #{qvalue_net.1} parent=1 // pred_check
      _
    $region43: #{qvalue_net.1} parent=1 // pred_check_branch
      %58 = sbr.rel (0) target = $region45
    $region44: #{qvalue_net.1} parent=1 // pred_region
      %59 = dma.done [#allocation7], 64
    $region45: #{qvalue_net.1} parent=1 // pred_fallthru
      _
    %v61 = vld [vmem:[%s0] sm:$0xff]
    %v62 = vpack.c.bf16 %v61, %v61
    %v63 = vld [vmem:[%s1] sm:$0xff]
    %v64 = vpack.c.bf16 %v63, %v63
    %v65 = vld [vmem:[#allocation3] sm:$0xf]
    %v66 = vld [vmem:[#allocation3 + $0x4] sm:$0xf]
    %v67 = vld [vmem:[#allocation6] sm:$0xf]
    %vm68 = vcmask 64512
    %v70 = vsel %vm68, %v64, 0
    %vm72 = vcmask 1043456
    %v74 = vsel %vm72, %v67, 0
    %76 = vmatprep.subr.bf16.mxu0 0
    %77 = vmatpush1.bf16.msra.mxu0 %v74
    %78 = vmatprep.subr.bf16.mxu0 0
    %79 = vmatpush1.bf16.msra.mxu0 0
    %80 = vmatprep.subr.bf16.mxu0 0
    %81 = vmatpush1.bf16.msra.mxu0 0
    %82 = vmatprep.subr.bf16.mxu0 0
    %83 = vmatpush1.bf16.msra.mxu0 0
    %84 = vmatprep.subr.bf16.mxu0 0
    %85 = vmatpush1.bf16.msra.mxu0 0
    %86 = vmatprep.subr.bf16.mxu0 0
    %87 = vmatpush1.bf16.msra.mxu0 0
    %88 = vmatprep.subr.bf16.mxu0 0
    %89 = vmatpush1.bf16.msra.mxu0 0
    %90 = vmatprep.subr.bf16.mxu0 0
    %91 = vmatpush1.bf16.msra.mxu0 0
    %92 = vmatprep.subr.bf16.mxu0 0
    %93 = vmatpush1.bf16.msra.mxu0 0
    %94 = vmatprep.subr.bf16.mxu0 0
    %95 = vmatpush1.bf16.msra.mxu0 0
    %96 = vmatprep.subr.bf16.mxu0 0
    %97 = vmatpush1.bf16.msra.mxu0 0
    %98 = vmatprep.subr.bf16.mxu0 0
    %99 = vmatpush1.bf16.msra.mxu0 0
    %100 = vmatprep.subr.bf16.mxu0 0
    %101 = vmatpush1.bf16.msra.mxu0 0
    %102 = vmatprep.subr.bf16.mxu0 0
    %103 = vmatpush1.bf16.msra.mxu0 0
    %104 = vmatprep.subr.bf16.mxu0 0
    %105 = vmatpush1.bf16.msra.mxu0 0
    %106 = vmatprep.subr.bf16.mxu0 0
    %107 = vmatpush1.bf16.msra.mxu0 0
    %108 = vmatprep.mubr.bf16.mxu0 0
    %109 = vmatmul.mubr.bf16.gmra.mrb[0].mxu0 %v70
    %v110 = vpop.f32.mrb[0].mxu0
    %v111 = vadd.f32 0.0, %v110
    %v112 = vpop.f32.mrb[0].mxu0
    %v113 = vpop.f32.mrb[0].mxu0
    %v114 = vpop.f32.mrb[0].mxu0
    %115 = vdwg.mxu0
    %v118 = vunpack.c.l.b16 %v65
    %v119 = vunpack.c.l.b16 %v66
    %v120 = vpack.c.b16 %v119, %v118
    %vm122 = vcmask 130048
    %v124 = vsel %vm122, %v62, 0
    %126 = vmatprep.subr.bf16.mxu0 0
    %127 = vmatpush1.bf16.msra.mxu0 %v120
    %128 = vmatprep.subr.bf16.mxu0 0
    %129 = vmatpush1.bf16.msra.mxu0 0
    %130 = vmatprep.subr.bf16.mxu0 0
    %131 = vmatpush1.bf16.msra.mxu0 0
    %132 = vmatprep.subr.bf16.mxu0 0
    %133 = vmatpush1.bf16.msra.mxu0 0
    %134 = vmatprep.subr.bf16.mxu0 0
    %135 = vmatpush1.bf16.msra.mxu0 0
    %136 = vmatprep.subr.bf16.mxu0 0
    %137 = vmatpush1.bf16.msra.mxu0 0
    %138 = vmatprep.subr.bf16.mxu0 0
    %139 = vmatpush1.bf16.msra.mxu0 0
    %140 = vmatprep.subr.bf16.mxu0 0
    %141 = vmatpush1.bf16.msra.mxu0 0
    %142 = vmatprep.subr.bf16.mxu0 0
    %143 = vmatpush1.bf16.msra.mxu0 0
    %144 = vmatprep.subr.bf16.mxu0 0
    %145 = vmatpush1.bf16.msra.mxu0 0
    %146 = vmatprep.subr.bf16.mxu0 0
    %147 = vmatpush1.bf16.msra.mxu0 0
    %148 = vmatprep.subr.bf16.mxu0 0
    %149 = vmatpush1.bf16.msra.mxu0 0
    %150 = vmatprep.subr.bf16.mxu0 0
    %151 = vmatpush1.bf16.msra.mxu0 0
    %152 = vmatprep.subr.bf16.mxu0 0
    %153 = vmatpush1.bf16.msra.mxu0 0
    %154 = vmatprep.subr.bf16.mxu0 0
    %155 = vmatpush1.bf16.msra.mxu0 0
    %156 = vmatprep.subr.bf16.mxu0 0
    %157 = vmatpush1.bf16.msra.mxu0 0
    %158 = vmatprep.mubr.bf16.mxu0 0
    %159 = vmatmul.mubr.bf16.gmra.mrb[0].mxu0 %v124
    %v160 = vpop.f32.mrb[0].mxu0
    %v161 = vadd.f32 %v111, %v160
    %v162 = vpop.f32.mrb[0].mxu0
    %v163 = vpop.f32.mrb[0].mxu0
    %v164 = vpop.f32.mrb[0].mxu0
    %165 = vdwg.mxu0
    %v166 = vld [vmem:[%s4] sm:$0x1]
    %v168 = vlaneseq
    %v169 = vshrl.u32 %v168, 7
    %v170 = vsub.s32 0, %v169
    %v171 = vrot.slane %v166, %v170
    %v173 = vadd.f32 %v161, %v171
    %v174 = vmax.f32 %v173, 0.0
    %v175 = vpack.c.bf16 %v174, %v174
    %v176 = vld [vmem:[%s5] sm:$0xf]
    %v177 = vld [vmem:[%s5 + $0x4] sm:$0xf]
    %v178 = vld [vmem:[%s5 + $0x8] sm:$0xf]
    %v179 = vld [vmem:[%s5 + $0xc] sm:$0xf]
    %v180 = vld [vmem:[%s6] sm:$0x1]
    %v182 = vlaneseq
    %v183 = vshrl.u32 %v182, 7
    %v184 = vsub.s32 0, %v183
    %v185 = vrot.slane %v180, %v184
    %v191 = vunpack.c.l.b16 %v176
    %v192 = vunpack.c.l.b16 %v177
    %v193 = vunpack.c.l.b16 %v178
    %v194 = vunpack.c.l.b16 %v179
    %v195 = vpack.c.b16 %v192, %v191
    %v196 = vpack.c.b16 %v194, %v193
    %vm199 = vcmask 261120
    %v201 = vsel %vm199, %v175, 0
    %203 = vmatprep.subr.bf16.mxu0 0
    %204 = vmatpush1.bf16.msra.mxu0 %v195
    %205 = vmatprep.subr.bf16.mxu0 0
    %206 = vmatpush1.bf16.msra.mxu0 %v196
    %207 = vmatprep.subr.bf16.mxu0 0
    %208 = vmatpush1.bf16.msra.mxu0 0
    %209 = vmatprep.subr.bf16.mxu0 0
    %210 = vmatpush1.bf16.msra.mxu0 0
    %211 = vmatprep.subr.bf16.mxu0 0
    %212 = vmatpush1.bf16.msra.mxu0 0
    %213 = vmatprep.subr.bf16.mxu0 0
    %214 = vmatpush1.bf16.msra.mxu0 0
    %215 = vmatprep.subr.bf16.mxu0 0
    %216 = vmatpush1.bf16.msra.mxu0 0
    %217 = vmatprep.subr.bf16.mxu0 0
    %218 = vmatpush1.bf16.msra.mxu0 0
    %219 = vmatprep.subr.bf16.mxu0 0
    %220 = vmatpush1.bf16.msra.mxu0 0
    %221 = vmatprep.subr.bf16.mxu0 0
    %222 = vmatpush1.bf16.msra.mxu0 0
    %223 = vmatprep.subr.bf16.mxu0 0
    %224 = vmatpush1.bf16.msra.mxu0 0
    %225 = vmatprep.subr.bf16.mxu0 0
    %226 = vmatpush1.bf16.msra.mxu0 0
    %227 = vmatprep.subr.bf16.mxu0 0
    %228 = vmatpush1.bf16.msra.mxu0 0
    %229 = vmatprep.subr.bf16.mxu0 0
    %230 = vmatpush1.bf16.msra.mxu0 0
    %231 = vmatprep.subr.bf16.mxu0 0
    %232 = vmatpush1.bf16.msra.mxu0 0
    %233 = vmatprep.subr.bf16.mxu0 0
    %234 = vmatpush1.bf16.msra.mxu0 0
    %235 = vmatprep.mubr.bf16.mxu0 0
    %236 = vmatmul.mubr.bf16.gmra.mrb[0].mxu0 %v201
    %v237 = vpop.f32.mrb[0].mxu0
    %v238 = vadd.f32 %v185, %v237
    %v239 = vpop.f32.mrb[0].mxu0
    %v240 = vpop.f32.mrb[0].mxu0
    %v241 = vpop.f32.mrb[0].mxu0
    %242 = vdwg.mxu0
    %v243 = vmax.f32 %v238, 0.0
    %244 = vxpose.xlu0.b32.start [1/16] %v243, 128
    %245 = vxpose.xlu0.b32.cont [2/16] 0.0, 128
    %246 = vxpose.xlu0.b32.cont [3/16] 0.0, 128
    %247 = vxpose.xlu0.b32.cont [4/16] 0.0, 128
    %248 = vxpose.xlu0.b32.cont [5/16] 0.0, 128
    %249 = vxpose.xlu0.b32.cont [6/16] 0.0, 128
    %250 = vxpose.xlu0.b32.cont [7/16] 0.0, 128
    %251 = vxpose.xlu0.b32.cont [8/16] 0.0, 128
    %252 = vxpose.xlu0.b32.cont [9/16] 0.0, 128
    %253 = vxpose.xlu0.b32.cont [10/16] 0.0, 128
    %254 = vxpose.xlu0.b32.cont [11/16] 0.0, 128
    %255 = vxpose.xlu0.b32.cont [12/16] 0.0, 128
    %256 = vxpose.xlu0.b32.cont [13/16] 0.0, 128
    %257 = vxpose.xlu0.b32.cont [14/16] 0.0, 128
    %258 = vxpose.xlu0.b32.cont [15/16] 0.0, 128
    %259 = vxpose.xlu0.b32.end [16/16] 0.0, 128
    %v260 = vpop.trf.xlu0
    %v261 = vpop.trf.xlu0
    %v262 = vpop.trf.xlu0
    %v263 = vpop.trf.xlu0
    %v264 = vpop.trf.xlu0
    %v265 = vpop.trf.xlu0
    %v266 = vpop.trf.xlu0
    %v267 = vpop.trf.xlu0
    %v268 = vpop.trf.xlu0
    %v269 = vpop.trf.xlu0
    %v270 = vpop.trf.xlu0
    %v271 = vpop.trf.xlu0
    %v272 = vpop.trf.xlu0
    %v273 = vpop.trf.xlu0
    %v274 = vpop.trf.xlu0
    %v275 = vpop.trf.xlu0
    %v276 = vld [vmem:[%s7] sm:$0xf]
    %v277 = vld [vmem:[%s7 + $0x4] sm:$0xf]
    %v278 = vld [vmem:[%s7 + $0x8] sm:$0xf]
    %v279 = vld [vmem:[%s7 + $0xc] sm:$0xf]
    %v280 = vunpack.c.l.bf16 %v276
    %v281 = vunpack.c.l.bf16 %v277
    %v282 = vunpack.c.l.bf16 %v278
    %v283 = vunpack.c.l.bf16 %v279
    %285 = vset.pattern.permute.xlu0 0
    %286 = vperm.xlu0 %285, %v280
    %v287 = vpop.permute.xlu0 %286
    %290 = vset.pattern.permute.xlu0 0
    %291 = vperm.xlu0 %290, %v281
    %v292 = vpop.permute.xlu0 %291
    %295 = vset.pattern.permute.xlu0 0
    %296 = vperm.xlu0 %295, %v282
    %v297 = vpop.permute.xlu0 %296
    %300 = vset.pattern.permute.xlu0 0
    %301 = vperm.xlu0 %300, %v283
    %v302 = vpop.permute.xlu0 %301
    %v304 = vmul.f32 %v260, %v287
    %v305 = vmul.f32 %v261, %v292
    %v306 = vmul.f32 %v262, %v297
    %v307 = vmul.f32 %v263, %v302
    %v308 = vsel %vm68, %v304, 0.0
    %v309 = vsel %vm68, %v305, 0.0
    %v310 = vadd.f32 %v308, %v309
    %v311 = vsel %vm68, %v306, 0.0
    %v312 = vadd.f32 %v310, %v311
    %v313 = vsel %vm68, %v307, 0.0
    %v314 = vadd.f32 %v312, %v313
    %v315 = vrot.slane %v314, 4
    %v316 = vadd.f32 %v314, %v315
    %v317 = vrot.slane %v316, 2
    %v318 = vadd.f32 %v316, %v317
    %v319 = vrot.slane %v318, 1
    %v320 = vadd.f32 %v318, %v319
    %s321 = sld [smem:[#allocation2]]
    %v322 = vstv %s321
    %v323 = vadd.f32 %v320, %v322
    %vm324 = vcmask 57344
    %325 = vst.msk [vmem:[#allocation8] sm:$0x1] %vm324, %v323
    // Predicated region
    $region46: #{qvalue_net.1} parent=1 // pred_check
      _
    $region47: #{qvalue_net.1} parent=1 // pred_check_branch
      %327 = sbr.rel (0) target = $region49
    $region48: #{qvalue_net.1} parent=1 // pred_region
      %s329 = ssub.s32 16, 16
      %330 = vsyncadd [#allocation5], %s329
      %s332 = sshll.u32 [#allocation8], 4
      %s333 = int_to_ptr.vmem [resolvable:$true] %s332
      %335 = dma.vmem_to_hbm [thread:$0]  %s333, 16, %s9, [#allocation5]
    $region49: #{qvalue_net.1} parent=1 // pred_fallthru
      _
    // Predicated region
    $region50: #{qvalue_net.1} parent=1 // pred_check
      _
    $region51: #{qvalue_net.1} parent=1 // pred_check_branch
      %337 = sbr.rel (0) target = $region53
    $region52: #{qvalue_net.1} parent=1 // pred_region
      %338 = dma.done [#allocation5], 16
    $region53: #{qvalue_net.1} parent=1 // pred_fallthru
      _
    %339 = vsyncpa [#allocation4], 1
    %340 = vsyncpa [#allocation7], 1
    %341 = vsyncpa [#allocation5], 1

</llo_original>
